<compile_context>
chip_gen: v5e
topology: v5e:2x2
jax: 0.10.0
libtpu: 0.0.40
codegen_flags: <defaults>
</compile_context>

<pallas_src>
import jax
import jax.numpy as jnp
from jax.experimental import pallas as pl
from jax.experimental.pallas import tpu as pltpu


def _cdiv(a: int, b: int) -> int:
    return -(-a // b)


def _round_up(x: int, m: int) -> int:
    return ((x + m - 1) // m) * m


def _vmem_bytes_2d(shape, dtype) -> int:
    """Rough padded VMEM footprint of a 2-D array (native (sublane,128) tiling)."""
    r, c = shape
    itemsize = jnp.dtype(dtype).itemsize
    sub = {4: 8, 2: 16, 1: 32}.get(itemsize, 8)
    return _round_up(max(int(r), 1), sub) * _round_up(max(int(c), 1), 128) * itemsize


def _choose_tile_n(n: int, c: int, itemsize: int, resident_bytes: int) -> int:
    """Row-tile size: sublane-aligned, sized by a VMEM byte budget (no row cap).

    Budget covers double-buffered logits tiles, double-buffered lane-sparse
    (tile_n,1) int32 targets (512 B/row in VMEM), and the (tile_n,1) f32
    accumulator scratch; total stays ~<= 24 MiB so it fits v7x's 64 MiB
    physical VMEM with headroom and v5e/v6e once the scoped limit is raised.
    """
    align = {4: 8, 2: 16, 1: 32}.get(itemsize, 8)
    c_pad = _round_up(c, 128)
    per_row = 2 * (c_pad * itemsize + 512) + 512
    budget = max((24 << 20) - resident_bytes, 2 << 20)
    rows = max(align, budget // per_row)
    n_aligned = _round_up(n, align)
    rows = min(rows, n_aligned)
    return max(align, (rows // align) * align)


def _make_criterion_kernel(has_prior: bool, n_valid: int, tile_n: int,
                           tiles_per_core: int, num_cores: int,
                           total_tiles: int):
    """Build a criterion kernel specialized on prior-usage / batch geometry."""
    inv_n = 1.0 / float(n_valid)
    n_full_tiles = n_valid // tile_n
    # Static: every grid step maps to a full, fully-valid tile -> no masking code.
    always_full = (n_valid % tile_n == 0) and (total_tiles % num_cores == 0)

    def kernel(*refs):
        if has_prior:
            (lam_ref, logits_ref, tgt_ref, w_ref, b_ref,
             pw_ref, pb_ref, out_ref, acc_ref) = refs
        else:
            (lam_ref, logits_ref, tgt_ref, w_ref, b_ref,
             out_ref, acc_ref) = refs
            pw_ref = pb_ref = None

        core = pl.program_id(0)
        step = pl.program_id(1)

        @pl.when(step == 0)
        def _init():
            acc_ref[...] = jnp.zeros_like(acc_ref)

        # ---- cross entropy: per-row NLL for this tile ----
        logits = logits_ref[...].astype(jnp.float32)          # (tile_n, C)
        tn, c = logits.shape
        tgt = tgt_ref[...]                                     # (tile_n, 1) i32

        row_max = jnp.max(logits, axis=-1, keepdims=True)
        shifted = logits - row_max                             # <= 0
        lse_sh = jnp.log(jnp.sum(jnp.exp(shifted), axis=-1, keepdims=True))

        # One-hot gather of the true (shifted) logit: convert + multiply feeding
        # the lane reduce (row_max cancels: lse - true == lse_sh - shifted_true).
        class_iota = jax.lax.broadcasted_iota(jnp.int32, (tn, c), 1)
        onehot = (class_iota == tgt).astype(jnp.float32)
        shifted_true = jnp.sum(shifted * onehot, axis=-1, keepdims=True)
        nll = lse_sh - shifted_true                            # (tile_n, 1)

        # ---- accumulate into the vector accumulator ----
        if always_full:
            acc_ref[...] += nll
        else:
            gtile = core * tiles_per_core + step               # unclamped tile idx

            @pl.when(gtile < n_full_tiles)
            def _full_tile():                                   # no masking cost
                acc_ref[...] += nll

            @pl.when(gtile >= n_full_tiles)
            def _ragged_tile():                                 # ragged or OOB tile
                row = gtile * tile_n + jax.lax.broadcasted_iota(
                    jnp.int32, (tn, 1), 0)
                # select (NOT multiply): garbage rows may hold NaN/inf.
                acc_ref[...] += jnp.where(row < n_valid, nll, 0.0)

        # ---- finalize: mean CE (+ lambda * sqrt(L2) on core 0 only) ----
        @pl.when(step == tiles_per_core - 1)
        def _finalize():
            ce = jnp.sum(acc_ref[...]) * jnp.float32(inv_n)
            if has_prior:
                dw = w_ref[...].astype(jnp.float32) - pw_ref[...].astype(jnp.float32)
                db = b_ref[...].astype(jnp.float32) - pb_ref[...].astype(jnp.float32)
            else:
                dw = w_ref[...].astype(jnp.float32)
                db = b_ref[...].astype(jnp.float32)
            l2_sq = jnp.sum(dw * dw) + jnp.sum(db * db)
            reg = lam_ref[0, 0] * jnp.sqrt(l2_sq)
            val = ce + jnp.where(core == 0, reg, jnp.float32(0.0))
            out_ref[...] = jnp.broadcast_to(val, out_ref.shape).astype(jnp.float32)

    return kernel


def custom_criterion(y_pred, y_true, model_params, *, prior_params=None,
                     _lambda=0.1, use_non_zero_prior=False, tile_n=None):
    """Pallas equivalent of CustomCriterion.forward(y_pred, y_true, model)."""
    w, b = model_params
    n, c = y_pred.shape
    has_prior = bool(use_non_zero_prior and prior_params is not None)
    itemsize = jnp.dtype(y_pred.dtype).itemsize

    b2d = b.reshape(1, -1)
    resident = _vmem_bytes_2d(w.shape, w.dtype) + _vmem_bytes_2d(b2d.shape, b2d.dtype)
    if has_prior:
        pw, pb = prior_params
        pb2d = pb.reshape(1, -1)
        resident += _vmem_bytes_2d(pw.shape, pw.dtype) + _vmem_bytes_2d(pb2d.shape, pb2d.dtype)

    if tile_n is None:
        tile_n = _choose_tile_n(n, c, itemsize, resident)

    total_tiles = _cdiv(n, tile_n)
    num_cores = 2 if total_tiles >= 2 else 1        # exposes both v7x TensorCores
    tiles_per_core = _cdiv(total_tiles, num_cores)

    tgt2d = y_true.astype(jnp.int32).reshape(n, 1)
    lam = jnp.asarray(_lambda, jnp.float32).reshape(1, 1)

    def tile_map(ci, ii):
        g = ci * tiles_per_core + ii
        return (jnp.minimum(g, total_tiles - 1), 0)  # clamp OOB duplicate tiles

    vmem_full = pl.BlockSpec(memory_space=pltpu.MemorySpace.VMEM)
    smem_full = pl.BlockSpec(memory_space=pltpu.MemorySpace.SMEM)

    in_specs = [
        smem_full,                                   # lambda (SMEM scalar)
        pl.BlockSpec((tile_n, c), tile_map),         # logits row tile
        pl.BlockSpec((tile_n, 1), tile_map),         # targets row tile
        vmem_full,                                   # weight (resident)
        vmem_full,                                   # bias   (resident)
    ]
    operands = [lam, y_pred, tgt2d, w, b2d]
    if has_prior:
        in_specs += [vmem_full, vmem_full]
        operands += [pw, pb2d]

    per_row = 2 * (_round_up(c, 128) * itemsize + 512) + 512
    needed = resident + tile_n * per_row + (1 << 20)
    vmem_limit = int(min(max(needed + needed // 4, 32 << 20), 96 << 20))

    out = pl.pallas_call(
        _make_criterion_kernel(has_prior, n, tile_n, tiles_per_core,
                               num_cores, total_tiles),
        out_shape=jax.ShapeDtypeStruct((num_cores, 8, 128), jnp.float32),
        grid=(num_cores, tiles_per_core),
        in_specs=in_specs,
        out_specs=pl.BlockSpec((1, 8, 128), lambda ci, ii: (ci, 0, 0)),
        scratch_shapes=[pltpu.VMEM((tile_n, 1), jnp.float32)],   # CE row accumulator
        compiler_params=pltpu.CompilerParams(
            dimension_semantics=("parallel", "arbitrary"),
            vmem_limit_bytes=vmem_limit),
    )(*operands)
    return jnp.sum(out[:, 0, 0])


def _reference(y_pred, y_true, model_params, prior_params, _lambda,
               use_non_zero_prior):
    """Plain-JAX reference of the PyTorch forward, for verification."""
    logits = y_pred.astype(jnp.float32)
    logZ = jax.nn.logsumexp(logits, axis=-1)
    true_logit = jnp.take_along_axis(
        logits, y_true.astype(jnp.int32)[:, None], axis=-1)[:, 0]
    ce = jnp.mean(logZ - true_logit)

    w, b = model_params
    if use_non_zero_prior and prior_params is not None:
        pw, pb = prior_params
    else:
        pw, pb = jnp.zeros_like(w), jnp.zeros_like(b)
    l2_sq = jnp.sum((w - pw) ** 2) + jnp.sum((b - pb) ** 2)
    return ce + _lambda * jnp.sqrt(l2_sq)


if __name__ == "__main__":
    key = jax.random.PRNGKey(0)
    k_logits, k_tgt, k_w, k_b, k_pw, k_pb, k_l2, k_t2 = jax.random.split(key, 8)

    N, C, D = 8, 8, 32          # batch, num classes, embedding dim
    LAMBDA = 0.1

    # Criterion inputs (y_pred are precomputed logits, as in the reference API).
    y_pred = jax.random.normal(k_logits, (N, C), dtype=jnp.float32)
    y_true = jax.random.randint(k_tgt, (N,), 0, C, dtype=jnp.int32)

    # ClipHead parameters (linear head D -> C), deterministic init.
    w = 0.02 * jax.random.normal(k_w, (C, D), dtype=jnp.float32)
    b = 0.02 * jax.random.normal(k_b, (C,), dtype=jnp.float32)
    model_params = (w, b)

    # Optional prior model parameters (use_non_zero_prior path).
    pw = 0.02 * jax.random.normal(k_pw, (C, D), dtype=jnp.float32)
    pb = 0.02 * jax.random.normal(k_pb, (C,), dtype=jnp.float32)
    prior_params = (pw, pb)

    # 1) Default path: l2_reg over model params (zero prior, no prior DMA at all).
    loss = custom_criterion(y_pred, y_true, model_params,
                            _lambda=LAMBDA, use_non_zero_prior=False)
    loss = jax.block_until_ready(loss)
    ref = _reference(y_pred, y_true, model_params, None, LAMBDA, False)
    assert jnp.allclose(loss, ref, rtol=1e-5, atol=1e-5), (loss, ref)

    # 2) Non-zero-prior path.
    loss_p = custom_criterion(y_pred, y_true, model_params,
                              prior_params=prior_params,
                              _lambda=LAMBDA, use_non_zero_prior=True)
    loss_p = jax.block_until_ready(loss_p)
    ref_p = _reference(y_pred, y_true, model_params, prior_params, LAMBDA, True)
    assert jnp.allclose(loss_p, ref_p, rtol=1e-5, atol=1e-5), (loss_p, ref_p)

    # 3) Ragged batch + multi-tile + two-core split (forced small tile):
    #    exercises the no-pad partial last tile, the clamped out-of-range tile
    #    on core 1, and the per-core partial-CE outputs.
    N2, C2, D2 = 200, 16, 8
    y_pred2 = jax.random.normal(k_l2, (N2, C2), dtype=jnp.float32)
    y_true2 = jax.random.randint(k_t2, (N2,), 0, C2, dtype=jnp.int32)
    w2 = 0.02 * jax.random.normal(k_w, (C2, D2), dtype=jnp.float32)
    b2 = 0.02 * jax.random.normal(k_b, (C2,), dtype=jnp.float32)
    loss_r = custom_criterion(y_pred2, y_true2, (w2, b2),
                              _lambda=LAMBDA, use_non_zero_prior=False,
                              tile_n=80)
    loss_r = jax.block_until_ready(loss_r)
    ref_r = _reference(y_pred2, y_true2, (w2, b2), None, LAMBDA, False)
    assert jnp.allclose(loss_r, ref_r, rtol=1e-5, atol=1e-5), (loss_r, ref_r)

    print("KERNEL_OK")
</pallas_src>

<mosaic_0001>
module attributes {stable_mosaic.version = 11 : i64} {
  func.func @kernel(%arg0: i32, %arg1: i32, %arg2: memref<1x1xf32, #tpu.memory_space<smem>>, %arg3: memref<8x8xf32, #tpu.memory_space<vmem>>, %arg4: memref<8x1xi32, #tpu.memory_space<vmem>>, %arg5: memref<8x32xf32, #tpu.memory_space<vmem>>, %arg6: memref<1x8xf32, #tpu.memory_space<vmem>>, %arg7: memref<1x8x128xf32, #tpu.memory_space<vmem>>, %arg8: memref<8x1xf32, #tpu.memory_space<vmem>>) attributes {dimension_semantics = [#tpu.dimension_semantics<parallel>, #tpu.dimension_semantics<arbitrary>], iteration_bounds = array<i64: 1, 1>, scalar_prefetch = 0 : i64, scratch_operands = 1 : i64, tpu.core_type = #tpu.core_type<tc>, window_params = [{transform_indices = @transform_0, window_bounds = array<i64: 1, 1>}, {transform_indices = @transform_1, window_bounds = array<i64: 8, 8>}, {transform_indices = @transform_2, window_bounds = array<i64: 8, 1>}, {pipeline_mode = #tpu.pipeline_mode<synchronous>, transform_indices = @transform_3, window_bounds = array<i64: 8, 32>}, {pipeline_mode = #tpu.pipeline_mode<synchronous>, transform_indices = @transform_4, window_bounds = array<i64: 1, 8>}, {transform_indices = @transform_5, window_bounds = array<i64: 1, 8, 128>}]} {
    %c0_i32 = arith.constant 0 : i32
    %0 = arith.cmpi eq, %arg1, %c0_i32 : i32
    %1 = arith.extui %0 : i1 to i32
    %c0_i32_0 = arith.constant 0 : i32
    %2 = arith.cmpi ne, %1, %c0_i32_0 : i32
    scf.if %2 {
      %cst_12 = arith.constant 0.000000e+00 : f32
      %28 = vector.broadcast %cst_12 : f32 to vector<8x1xf32>
      %c0_13 = arith.constant 0 : index
      %c0_14 = arith.constant 0 : index
      %29 = vector.load %arg8[%c0_13, %c0_14] : memref<8x1xf32, #tpu.memory_space<vmem>>, vector<8x1xf32>
      tpu.vector_store %arg8[%c0_13, %c0_14], %28 {strides = array<i32>} : memref<8x1xf32, #tpu.memory_space<vmem>>, vector<8x1xf32>,
    } else {
    }
    %c0 = arith.constant 0 : index
    %c0_1 = arith.constant 0 : index
    %3 = vector.load %arg3[%c0, %c0_1] : memref<8x8xf32, #tpu.memory_space<vmem>>, vector<8x8xf32>
    %c0_2 = arith.constant 0 : index
    %c0_3 = arith.constant 0 : index
    %4 = vector.load %arg4[%c0_2, %c0_3] : memref<8x1xi32, #tpu.memory_space<vmem>>, vector<8x1xi32>
    %cst = arith.constant dense<0xFF800000> : vector<8xf32>
    %5 = vector.multi_reduction <maximumf>, %3, %cst [1] : vector<8x8xf32> to vector<8xf32>
    %6 = vector.shape_cast %5 : vector<8xf32> to vector<8x1xf32>
    %7 = vector.broadcast %6 : vector<8x1xf32> to vector<8x8xf32>
    %8 = arith.subf %3, %7 : vector<8x8xf32>
    %9 = math.exp %8 : vector<8x8xf32>
    %cst_4 = arith.constant dense<0.000000e+00> : vector<8xf32>
    %10 = vector.multi_reduction <add>, %9, %cst_4 [1] : vector<8x8xf32> to vector<8xf32>
    %11 = vector.shape_cast %10 : vector<8xf32> to vector<8x1xf32>
    %12 = math.log %11 : vector<8x1xf32>
    %13 = tpu.iota {dimensions = array<i32: 1>} : vector<8x8xi32>
    %14 = vector.broadcast %4 : vector<8x1xi32> to vector<8x8xi32>
    %15 = arith.cmpi eq, %13, %14 : vector<8x8xi32>
    %16 = arith.extui %15 : vector<8x8xi1> to vector<8x8xi32>
    %17 = arith.sitofp %16 : vector<8x8xi32> to vector<8x8xf32>
    %18 = arith.mulf %8, %17 : vector<8x8xf32>
    %cst_5 = arith.constant dense<0.000000e+00> : vector<8xf32>
    %19 = vector.multi_reduction <add>, %18, %cst_5 [1] : vector<8x8xf32> to vector<8xf32>
    %20 = vector.shape_cast %19 : vector<8xf32> to vector<8x1xf32>
    %21 = arith.subf %12, %20 : vector<8x1xf32>
    %c0_6 = arith.constant 0 : index
    %c0_7 = arith.constant 0 : index
    %22 = vector.load %arg8[%c0_6, %c0_7] : memref<8x1xf32, #tpu.memory_space<vmem>>, vector<8x1xf32>
    %23 = arith.addf %22, %21 : vector<8x1xf32>
    %c0_8 = arith.constant 0 : index
    %c0_9 = arith.constant 0 : index
    %24 = vector.load %arg8[%c0_8, %c0_9] : memref<8x1xf32, #tpu.memory_space<vmem>>, vector<8x1xf32>
    tpu.vector_store %arg8[%c0_8, %c0_9], %23 {strides = array<i32>} : memref<8x1xf32, #tpu.memory_space<vmem>>, vector<8x1xf32>,
    %c0_i32_10 = arith.constant 0 : i32
    %25 = arith.cmpi eq, %arg1, %c0_i32_10 : i32
    %26 = arith.extui %25 : i1 to i32
    %c0_i32_11 = arith.constant 0 : i32
    %27 = arith.cmpi ne, %26, %c0_i32_11 : i32
    scf.if %27 {
      %c0_12 = arith.constant 0 : index
      %c0_13 = arith.constant 0 : index
      %28 = vector.load %arg8[%c0_12, %c0_13] : memref<8x1xf32, #tpu.memory_space<vmem>>, vector<8x1xf32>
      %29 = vector.shape_cast %28 : vector<8x1xf32> to vector<1x8x1xf32>
      %cst_14 = arith.constant dense<0.000000e+00> : vector<1xf32>
      %30 = vector.multi_reduction <add>, %29, %cst_14 [1, 2] : vector<1x8x1xf32> to vector<1xf32>
      %31 = vector.shape_cast %30 : vector<1xf32> to vector<1x1x1xf32>
      %32 = vector.extract %31[0, 0, 0] : f32 from vector<1x1x1xf32>
      %cst_15 = arith.constant 1.250000e-01 : f32
      %33 = arith.mulf %32, %cst_15 : f32
      %c0_16 = arith.constant 0 : index
      %c0_17 = arith.constant 0 : index
      %34 = vector.load %arg5[%c0_16, %c0_17] : memref<8x32xf32, #tpu.memory_space<vmem>>, vector<8x32xf32>
      %c0_18 = arith.constant 0 : index
      %c0_19 = arith.constant 0 : index
      %35 = vector.load %arg6[%c0_18, %c0_19] : memref<1x8xf32, #tpu.memory_space<vmem>>, vector<1x8xf32>
      %36 = arith.mulf %34, %34 : vector<8x32xf32>
      %37 = vector.shape_cast %36 : vector<8x32xf32> to vector<1x8x32xf32>
      %cst_20 = arith.constant dense<0.000000e+00> : vector<1xf32>
      %38 = vector.multi_reduction <add>, %37, %cst_20 [1, 2] : vector<1x8x32xf32> to vector<1xf32>
      %39 = vector.shape_cast %38 : vector<1xf32> to vector<1x1x1xf32>
      %40 = vector.extract %39[0, 0, 0] : f32 from vector<1x1x1xf32>
      %41 = arith.mulf %35, %35 : vector<1x8xf32>
      %42 = vector.shape_cast %41 : vector<1x8xf32> to vector<1x1x8xf32>
      %cst_21 = arith.constant dense<0.000000e+00> : vector<1xf32>
      %43 = vector.multi_reduction <add>, %42, %cst_21 [1, 2] : vector<1x1x8xf32> to vector<1xf32>
      %44 = vector.shape_cast %43 : vector<1xf32> to vector<1x1x1xf32>
      %45 = vector.extract %44[0, 0, 0] : f32 from vector<1x1x1xf32>
      %46 = arith.addf %40, %45 : f32
      %c0_22 = arith.constant 0 : index
      %c0_23 = arith.constant 0 : index
      %47 = memref.load %arg2[%c0_22, %c0_23] : memref<1x1xf32, #tpu.memory_space<smem>>
      %48 = math.sqrt %46 : f32
      %49 = arith.mulf %47, %48 : f32
      %c0_i32_24 = arith.constant 0 : i32
      %50 = arith.cmpi eq, %arg0, %c0_i32_24 : i32
      %cst_25 = arith.constant 0.000000e+00 : f32
      %51 = arith.select %50, %49, %cst_25 : f32
      %52 = arith.addf %33, %51 : f32
      %53 = vector.broadcast %52 : f32 to vector<1x8x128xf32>
      %c0_26 = arith.constant 0 : index
      %c0_27 = arith.constant 0 : index
      %c0_28 = arith.constant 0 : index
      %54 = vector.load %arg7[%c0_26, %c0_27, %c0_28] : memref<1x8x128xf32, #tpu.memory_space<vmem>>, vector<1x8x128xf32>
      tpu.vector_store %arg7[%c0_26, %c0_27, %c0_28], %53 {strides = array<i32>} : memref<1x8x128xf32, #tpu.memory_space<vmem>>, vector<1x8x128xf32>,
    } else {
    }
    return
  }
  func.func @transform_0(%arg0: i32, %arg1: i32) -> (i32, i32) {
    %c0_i32 = arith.constant 0 : i32
    %c0_i32_0 = arith.constant 0 : i32
    %c0_i32_1 = arith.constant 0 : i32
    return %c0_i32, %c0_i32_0 : i32, i32
  }
  func.func @transform_1(%arg0: i32, %arg1: i32) -> (i32, i32) {
    %c1_i32 = arith.constant 1 : i32
    %0 = arith.muli %arg0, %c1_i32 : i32
    %1 = arith.addi %0, %arg1 : i32
    %c0_i32 = arith.constant 0 : i32
    %2 = arith.minsi %1, %c0_i32 : i32
    %c0_i32_0 = arith.constant 0 : i32
    %c0_i32_1 = arith.constant 0 : i32
    return %2, %c0_i32_0 : i32, i32
  }
  func.func @transform_2(%arg0: i32, %arg1: i32) -> (i32, i32) {
    %c1_i32 = arith.constant 1 : i32
    %0 = arith.muli %arg0, %c1_i32 : i32
    %1 = arith.addi %0, %arg1 : i32
    %c0_i32 = arith.constant 0 : i32
    %2 = arith.minsi %1, %c0_i32 : i32
    %c0_i32_0 = arith.constant 0 : i32
    %c0_i32_1 = arith.constant 0 : i32
    return %2, %c0_i32_0 : i32, i32
  }
  func.func @transform_3(%arg0: i32, %arg1: i32) -> (i32, i32) {
    %c0_i32 = arith.constant 0 : i32
    %c0_i32_0 = arith.constant 0 : i32
    %c0_i32_1 = arith.constant 0 : i32
    return %c0_i32, %c0_i32_0 : i32, i32
  }
  func.func @transform_4(%arg0: i32, %arg1: i32) -> (i32, i32) {
    %c0_i32 = arith.constant 0 : i32
    %c0_i32_0 = arith.constant 0 : i32
    %c0_i32_1 = arith.constant 0 : i32
    return %c0_i32, %c0_i32_0 : i32, i32
  }
  func.func @transform_5(%arg0: i32, %arg1: i32) -> (i32, i32, i32) {
    %c0_i32 = arith.constant 0 : i32
    %c0_i32_0 = arith.constant 0 : i32
    %c0_i32_1 = arith.constant 0 : i32
    return %arg0, %c0_i32, %c0_i32_0 : i32, i32, i32
  }
}

</mosaic_0001>

<llo_original>
// kernel: tpu_custom_call.1
$region0: #{tpu_custom_call.1}
  #allocation0 [shape = 'u32[]', space=smem, size = 0x4, offset = 0x4, fixed_abs, tag = 'smem constant byte address 0x4 - core index']
  #allocation1 [shape = 'u32[72,128]{1,0:T(1,128)}', space=vmem, size = 0x9000, scoped, tag = 'internal scratch']
  #allocation2 [shape = 'f32[8,1]{1,0:T(8,128)}', space=vmem, size = 0x1000, scoped, tag = 'scratch operand']
  #allocation3 [shape = 'f32[1,1]{1,0:T(1,128)S(6)}', space=smem, size = 0x200, scoped, tag = 'scoped memory for tpu_custom_call.1']
  %s0 = inlined_call_operand.<no memory space> [shape: f32[1,1], index: 0, kind: input, shape index: {}]
  %s1 = inlined_call_operand.vmem [shape: f32[8,8], index: 1, kind: input, shape index: {}]
  %s2 = inlined_call_operand.vmem [shape: s32[8,1], index: 2, kind: input, shape index: {}]
  %s3 = inlined_call_operand.hbm [shape: f32[8,32], index: 3, kind: input, shape index: {}]
  %s4 = inlined_call_operand.vmem [shape: f32[1,8], index: 4, kind: input, shape index: {}]
  %s5 = inlined_call_operand.hbm [shape: f32[1,8,128], index: 5, kind: output, shape index: {}]
  %s6 = sld [smem:[#allocation0]]
  $region42: #{tpu_custom_call.1} parent=0
    _
  %s8 = ssub.s32 1, %s6
  %s9 = scalar_select 0, %s8, %s6
  %10 = sst [smem:[#allocation3]] %s0
  $region1: #{tpu_custom_call.1} parent=0
    #allocation4 [shape = 'u8[4096]{0}', space=vmem, size = 0x1000, scoped, tag = 'input window, operand 3, single buffered']
    #allocation5 [shape = 's32[1]{0}', space=sflag, size = 0x4, scoped, tag = 'scoped memory for tpu_custom_call.1']
    #allocation6 [shape = 's32[1]{0}', space=sflag, size = 0x4, scoped, tag = 'scoped memory for tpu_custom_call.1']
    #allocation7 [shape = 'u8[4096]{0}', space=vmem, size = 0x1000, scoped, tag = 'output window, operand 0, single buffered']
    %11 = vsyncpa [#allocation5], 0
    %12 = vsyncpa [#allocation6], 0
    // Predicated region
    $region2: #{tpu_custom_call.1} parent=1 // pred_check
      _
    $region3: #{tpu_custom_call.1} parent=1 // pred_check_branch
      %14 = sbr.rel (0) target = $region5
    $region4: #{tpu_custom_call.1} parent=1 // pred_region
      _
    $region5: #{tpu_custom_call.1} parent=1 // pred_fallthru
      _
    // Predicated region
    $region6: #{tpu_custom_call.1} parent=1 // pred_check
      _
    $region7: #{tpu_custom_call.1} parent=1 // pred_check_branch
      %16 = sbr.rel (0) target = $region9
    $region8: #{tpu_custom_call.1} parent=1 // pred_region
      %s17 = sadd.s32 0, 0
      %p18 = scmp.lt.s32.totalorder %s17, 0
      %s19 = scalar_select %p18, %s17, 0
      %p20 = scmp.lt.s32.totalorder %s19, 0
      %s21 = scalar_select %p20, %s19, 0
      %s22 = smul.addr %s21, 8
      %s23 = scalar_lea.vmem %s1, %s22
      %s24 = sadd.s32 0, 0
      %p25 = scmp.lt.s32.totalorder %s24, 0
      %s26 = scalar_select %p25, %s24, 0
    $region9: #{tpu_custom_call.1} parent=1 // pred_fallthru
      _
    // Predicated region
    $region10: #{tpu_custom_call.1} parent=1 // pred_check
      _
    $region11: #{tpu_custom_call.1} parent=1 // pred_check_branch
      %28 = sbr.rel (0) target = $region13
    $region12: #{tpu_custom_call.1} parent=1 // pred_region
      %s29 = sadd.s32 0, 0
      %p30 = scmp.lt.s32.totalorder %s29, 0
      %s31 = scalar_select %p30, %s29, 0
      %p32 = scmp.lt.s32.totalorder %s31, 0
      %s33 = scalar_select %p32, %s31, 0
      %s34 = smul.addr %s33, 8
      %s35 = scalar_lea.vmem %s2, %s34
      %s36 = sadd.s32 0, 0
      %p37 = scmp.lt.s32.totalorder %s36, 0
      %s38 = scalar_select %p37, %s36, 0
    $region13: #{tpu_custom_call.1} parent=1 // pred_fallthru
      _
    // Predicated region
    $region14: #{tpu_custom_call.1} parent=1 // pred_check
      _
    $region15: #{tpu_custom_call.1} parent=1 // pred_check_branch
      %40 = sbr.rel (0) target = $region17
    $region16: #{tpu_custom_call.1} parent=1 // pred_region
      %42 = vsyncadd [#allocation5], 0
      %s44 = sshll.u32 %s3, 4
      %s45 = int_to_ptr.hbm [resolvable:$true] %s44
      %s46 = sshll.u32 [#allocation4], 4
      %s47 = int_to_ptr.vmem [resolvable:$true] %s46
      %49 = dma.hbm_to_vmem [thread:$0]  %s45, 128, %s47, [#allocation5]
    $region17: #{tpu_custom_call.1} parent=1 // pred_fallthru
      _
    // Predicated region
    $region18: #{tpu_custom_call.1} parent=1 // pred_check
      _
    $region19: #{tpu_custom_call.1} parent=1 // pred_check_branch
      %51 = sbr.rel (0) target = $region21
    $region20: #{tpu_custom_call.1} parent=1 // pred_region
      _
    $region21: #{tpu_custom_call.1} parent=1 // pred_fallthru
      _
    // Predicated region
    $region22: #{tpu_custom_call.1} parent=1 // pred_check
      _
    $region23: #{tpu_custom_call.1} parent=1 // pred_check_branch
      %53 = sbr.rel (0) target = $region25
    $region24: #{tpu_custom_call.1} parent=1 // pred_region
      %55 = dma.done [#allocation5], 128
    $region25: #{tpu_custom_call.1} parent=1 // pred_fallthru
      _
    %s56 = sadd.s32 0, 0
    %p57 = scmp.lt.s32.totalorder %s56, 0
    %s58 = scalar_select %p57, %s56, 0
    %p59 = scmp.lt.s32.totalorder %s58, 0
    %s60 = scalar_select %p59, %s58, 0
    %s61 = smul.addr %s60, 8
    %s62 = scalar_lea.vmem %s1, %s61
    %s63 = sadd.s32 0, 0
    %p64 = scmp.lt.s32.totalorder %s63, 0
    %s65 = scalar_select %p64, %s63, 0
    %p66 = scmp.lt.s32.totalorder %s65, 0
    %s67 = scalar_select %p66, %s65, 0
    %s68 = smul.addr %s67, 8
    %s69 = scalar_lea.vmem %s2, %s68
    %s70 = sadd.s32 0, 0
    %p71 = scmp.lt.s32.totalorder %s70, 0
    %s72 = scalar_select %p71, %s70, 0
    %p73 = scmp.lt.s32.totalorder %s72, 0
    %s74 = scalar_select %p73, %s72, 0
    %s75 = smul.addr %s74, 8
    %s76 = scalar_lea.vmem %s1, %s75
    %s77 = sadd.s32 0, 0
    %p78 = scmp.lt.s32.totalorder %s77, 0
    %s79 = scalar_select %p78, %s77, 0
    %s80 = sadd.s32 0, 0
    %p81 = scmp.lt.s32.totalorder %s80, 0
    %s82 = scalar_select %p81, %s80, 0
    %p83 = scmp.lt.s32.totalorder %s82, 0
    %s84 = scalar_select %p83, %s82, 0
    %s85 = smul.addr %s84, 8
    %s86 = scalar_lea.vmem %s2, %s85
    %s87 = sadd.s32 0, 0
    %p88 = scmp.lt.s32.totalorder %s87, 0
    %s89 = scalar_select %p88, %s87, 0
    %p90 = scmp.eq.s32.totalorder 0, 0
    // Predicated region
    $region26: #{tpu_custom_call.1} parent=1 // pred_check
      %p91 = pneg %p90
    $region27: #{tpu_custom_call.1} parent=1 // pred_check_branch
      %93 = sbr.rel (%p91) target = $region29
    $region28: #{tpu_custom_call.1} parent=1 // pred_region
      %vm94 = vcmask 7168
      %95 = vst.msk [vmem:[#allocation2] sm:$0xff] %vm94, 0.0
    $region29: #{tpu_custom_call.1} parent=1 // pred_fallthru
      _
    %v96 = vld [vmem:[%s76] sm:$0xff]
    %v97 = vld [vmem:[%s86] sm:$0xff]
    %vm98 = vcmask 64512
    %v99 = vsel %vm98, %v96, -inf
    %100 = vmax.xlane.f32.xlu0 %v99
    %v101 = vpop.xlane.xlu0 %100
    %v102 = vsub.f32 %v96, %v101
    %v103 = vmul.f32 %v102, 1.442695
    %v104 = vpow.pop %v103
    %v105 = vsel %vm98, %v104, 0.0
    %106 = vadd.xlane.f32.xlu0 %v105
    %v107 = vpop.xlane.xlu0 %106
    %v108 = vlog2.pop %v107
    %v109 = vmul.f32 %v108, 0.6931472
    %v110 = vlaneseq
    %v111 = vand.u32 %v110, 127
    %112 = vset.pattern.permute.xlu0 0
    %113 = vperm.xlu0 %112, %v97
    %v114 = vpop.permute.xlu0 %113
    %vm115 = vcmp.eq.s32.totalorder %v111, %v114
    %v116 = vsel %vm115, 1, 0
    %v117 = vcvt.s32.f32 %v116
    %v118 = vmul.f32 %v102, %v117
    %v119 = vsel %vm98, %v118, 0.0
    %120 = vadd.xlane.f32.xlu0 %v119
    %v121 = vpop.xlane.xlu0 %120
    %v122 = vsub.f32 %v109, %v121
    %v123 = vld [vmem:[#allocation2] sm:$0xff]
    %v124 = vadd.f32 %v123, %v122
    %vm125 = vcmask 7168
    %126 = vst.msk [vmem:[#allocation2] sm:$0xff] %vm125, %v124
    // Predicated region
    $region30: #{tpu_custom_call.1} parent=1 // pred_check
      %p127 = pneg %p90
    $region31: #{tpu_custom_call.1} parent=1 // pred_check_branch
      %129 = sbr.rel (%p127) target = $region33
    $region32: #{tpu_custom_call.1} parent=1 // pred_region
      %v130 = vld [vmem:[#allocation2] sm:$0xff]
      %v131 = vsel %vm125, %v130, 0.0
      %132 = vadd.xlane.f32.xlu0 %v131
      %v133 = vpop.xlane.xlu0 %132
      %v134 = vrot.slane %v133, 4
      %v135 = vadd.f32 %v133, %v134
      %v136 = vrot.slane %v135, 2
      %v137 = vadd.f32 %v135, %v136
      %v138 = vrot.slane %v137, 1
      %v139 = vadd.f32 %v137, %v138
      %s140 = vtos %v139
      %s141 = smul.f32 %s140, 0.125
      %v142 = vld [vmem:[#allocation4] sm:$0xff]
      %v143 = vld [vmem:[%s4] sm:$0x1]
      %v144 = vmul.f32 %v142, %v142
      %vm145 = vcmask 261120
      %v146 = vsel %vm145, %v144, 0.0
      %147 = vadd.xlane.f32.xlu0 %v146
      %v148 = vpop.xlane.xlu0 %147
      %v149 = vrot.slane %v148, 4
      %v150 = vadd.f32 %v148, %v149
      %v151 = vrot.slane %v150, 2
      %v152 = vadd.f32 %v150, %v151
      %v153 = vrot.slane %v152, 1
      %v154 = vadd.f32 %v152, %v153
      %s155 = vtos %v154
      %v156 = vmul.f32 %v143, %v143
      %vm157 = vcmask 57344
      %v158 = vsel %vm157, %v156, 0.0
      %159 = vadd.xlane.f32.xlu0 %v158
      %v160 = vpop.xlane.xlu0 %159
      %v161 = vrot.slane %v160, 4
      %v162 = vadd.f32 %v160, %v161
      %v163 = vrot.slane %v162, 2
      %v164 = vadd.f32 %v162, %v163
      %v165 = vrot.slane %v164, 1
      %v166 = vadd.f32 %v164, %v165
      %s167 = vtos %v166
      %s168 = sadd.f32 %s155, %s167
      %s169 = sld [smem:[#allocation3]]
      %v170 = vstv %s168
      %v171 = vrsqrt.pop %v170
      %v172 = vmul.f32 %v171, %v170
      %v173 = vmul.f32 %v172, %v171
      %v174 = vmul.f32 0.5, %v173
      %v175 = vsub.f32 1.5, %v174
      %v176 = vmul.f32 %v171, %v175
      %v177 = vmul.f32 %v170, %v176
      %vm178 = vcmp.eq.f32.partialorder %v170, inf
      %v179 = vsel %vm178, %v170, %v177
      %vm180 = vcmp.eq.f32.partialorder %v170, 0.0
      %v181 = vand.u32 %v170, 2147483648
      %v182 = vsel %vm180, %v181, %v179
      %s183 = vtos %v182
      %s184 = smul.f32 %s169, %s183
      %p185 = scmp.eq.s32.totalorder 0, 0
      %s186 = scalar_select %p185, %s184, 0.0
      %s187 = sadd.f32 %s141, %s186
      %v188 = vstv %s187
      %189 = vst [vmem:[#allocation7] sm:$0xff] %v188
    $region33: #{tpu_custom_call.1} parent=1 // pred_fallthru
      _
    // Predicated region
    $region34: #{tpu_custom_call.1} parent=1 // pred_check
      _
    $region35: #{tpu_custom_call.1} parent=1 // pred_check_branch
      %191 = sbr.rel (0) target = $region37
    $region36: #{tpu_custom_call.1} parent=1 // pred_region
      %193 = vsyncadd [#allocation6], 0
      %s195 = sshll.u32 [#allocation7], 4
      %s196 = int_to_ptr.vmem [resolvable:$true] %s195
      %s197 = sshll.u32 %s5, 4
      %s198 = int_to_ptr.hbm [resolvable:$true] %s197
      %200 = dma.vmem_to_hbm [thread:$0]  %s196, 128, %s198, [#allocation6]
    $region37: #{tpu_custom_call.1} parent=1 // pred_fallthru
      _
    // Predicated region
    $region38: #{tpu_custom_call.1} parent=1 // pred_check
      _
    $region39: #{tpu_custom_call.1} parent=1 // pred_check_branch
      %202 = sbr.rel (0) target = $region41
    $region40: #{tpu_custom_call.1} parent=1 // pred_region
      %204 = dma.done [#allocation6], 128
    $region41: #{tpu_custom_call.1} parent=1 // pred_fallthru
      _
    %205 = vsyncpa [#allocation5], 1
    %206 = vsyncpa [#allocation6], 1

</llo_original>
